<compile_context>
chip_gen: v5e
topology: v5e:2x2
jax: 0.10.0
libtpu: 0.0.40
codegen_flags: <defaults>
</compile_context>

<pallas_src>
import functools

import jax
import jax.numpy as jnp
from jax.experimental import pallas as pl
from jax.experimental.pallas import tpu as pltpu


def _round_up(x: int, m: int) -> int:
    return ((x + m - 1) // m) * m


def mean_agg_kernel(adj_ref, feat_ref, out_ref, acc_ref, *, deg_col):
    """One (row-tile, K-tile) grid step of out = (adj @ [feats | 1]) / deg."""
    k = pl.program_id(1)

    @pl.when(k == 0)
    def _init():
        acc_ref[...] = jnp.zeros_like(acc_ref)

    # bf16 x bf16 -> f32 MXU matmul. The fused ones column in feat_ref makes the MXU
    # also produce the per-row neighbor count (degree) in lane `deg_col` of the
    # accumulator, so no cross-lane (XLU) reduction over the mask is needed.
    acc_ref[...] += jnp.dot(adj_ref[...], feat_ref[...],
                            preferred_element_type=jnp.float32)

    @pl.when(k == pl.num_programs(1) - 1)
    def _finalize():
        acc = acc_ref[...]                            # (tile_b, fp) f32
        deg = acc[:, deg_col:deg_col + 1]             # (tile_b, 1) accumulated degree
        # max(deg, 1) guards padded / isolated rows (PyTorch would emit NaN there).
        inv = 1.0 / jnp.maximum(deg, 1.0)
        out_ref[...] = acc * inv                      # lane-dense f32 store


def mean_aggregator_forward(adj_mask, feats, *, tile_b=256, tile_u=512):
    """adj_mask: (B, U) {0,1} neighbor mask, feats: (U, F) -> (B, F) neighbor means."""
    B, U = adj_mask.shape
    U2, F = feats.shape
    assert U == U2, "mask columns must match feature rows"

    # Lane-dense feature width: F real columns + 1 fused degree column, padded to 128.
    fp = _round_up(F + 1, 128)

    tile_b = min(_round_up(B, 8), _round_up(tile_b, 8))      # sublane multiple
    tile_u = min(_round_up(U, 128), _round_up(tile_u, 128))  # lane multiple
    bp = _round_up(B, tile_b)
    up = _round_up(U, tile_u)

    # bf16 operands (the {0,1} mask is exact in bf16); zero padding contributes nothing
    # to either the feature sums or the degree.
    adj_p = jnp.zeros((bp, up), jnp.bfloat16).at[:B, :U].set(
        adj_mask.astype(jnp.bfloat16))
    feats_p = jnp.zeros((up, fp), jnp.bfloat16).at[:U, :F].set(
        feats.astype(jnp.bfloat16))
    feats_p = feats_p.at[:U, F].set(1.0)                     # fused degree column

    grid = (bp // tile_b, up // tile_u)
    kernel = functools.partial(mean_agg_kernel, deg_col=F)

    out = pl.pallas_call(
        kernel,
        out_shape=jax.ShapeDtypeStruct((bp, fp), jnp.float32),
        grid_spec=pltpu.PrefetchScalarGridSpec(
            num_scalar_prefetch=0,
            grid=grid,
            in_specs=[
                pl.BlockSpec((tile_b, tile_u), lambda i, k: (i, k)),   # adj tile
                pl.BlockSpec((tile_u, fp), lambda i, k: (k, 0)),       # feats K-tile
            ],
            out_specs=pl.BlockSpec((tile_b, fp), lambda i, k: (i, 0)), # resident over k
            scratch_shapes=[pltpu.VMEM((tile_b, fp), jnp.float32)],    # f32 accumulator
        ),
        compiler_params=pltpu.CompilerParams(
            dimension_semantics=("parallel", "arbitrary")),
    )(adj_p, feats_p)

    return out[:B, :F]


if __name__ == "__main__":
    # Small shapes consistent with MeanAggregator.forward: B batch nodes, U unique
    # sampled neighbor nodes, F-dim features, num_sample=10 neighbors per node.
    B, U, F = 128, 256, 64
    NUM_SAMPLE = 10

    key = jax.random.PRNGKey(0)
    k_idx, k_feat = jax.random.split(key)

    # Dense neighbor mask exactly as the module builds it (duplicates collapse, so each
    # row has between 1 and NUM_SAMPLE ones).
    nbr_idx = jax.random.randint(k_idx, (B, NUM_SAMPLE), 0, U)
    adj = jnp.zeros((B, U), jnp.float32).at[jnp.arange(B)[:, None], nbr_idx].set(1.0)

    feats = jax.random.normal(k_feat, (U, F), jnp.float32)   # embed_matrix

    out = mean_aggregator_forward(adj, feats, tile_b=64, tile_u=128)  # grid = (2, 2)
    jax.block_until_ready(out)
    assert out.shape == (B, F)

    # Reference 1: same bf16 operand cast the kernel uses, f32 math (tight check).
    adj_bf = adj.astype(jnp.bfloat16).astype(jnp.float32)
    feats_bf = feats.astype(jnp.bfloat16).astype(jnp.float32)
    deg = jnp.maximum(adj_bf.sum(1, keepdims=True), 1.0)
    ref_bf = (adj_bf @ feats_bf) / deg
    assert bool(jnp.allclose(out, ref_bf, atol=1e-3, rtol=1e-3)), \
        float(jnp.max(jnp.abs(out - ref_bf)))

    # Reference 2: pure f32 module semantics (loose check; bf16 operand rounding only).
    deg_f = jnp.maximum(adj.sum(1, keepdims=True), 1.0)
    ref_f32 = (adj @ feats) / deg_f
    assert bool(jnp.allclose(out, ref_f32, atol=2e-2, rtol=2e-2)), \
        float(jnp.max(jnp.abs(out - ref_f32)))

    print("KERNEL_OK")
</pallas_src>

<mosaic_0001>
module attributes {stable_mosaic.version = 11 : i64} {
  func.func @mean_agg_kernel(%arg0: i32, %arg1: i32, %arg2: memref<64x128xbf16, #tpu.memory_space<vmem>>, %arg3: memref<128x128xbf16, #tpu.memory_space<vmem>>, %arg4: memref<64x128xf32, #tpu.memory_space<vmem>>, %arg5: memref<64x128xf32, #tpu.memory_space<vmem>>) attributes {dimension_semantics = [#tpu.dimension_semantics<parallel>, #tpu.dimension_semantics<arbitrary>], iteration_bounds = array<i64: 2, 2>, scalar_prefetch = 0 : i64, scratch_operands = 1 : i64, tpu.core_type = #tpu.core_type<tc>, window_params = [{transform_indices = @transform_0, window_bounds = array<i64: 64, 128>}, {transform_indices = @transform_1, window_bounds = array<i64: 128, 128>}, {transform_indices = @transform_2, window_bounds = array<i64: 64, 128>}]} {
    %c0_i32 = arith.constant 0 : i32
    %0 = arith.cmpi eq, %arg1, %c0_i32 : i32
    %1 = arith.extui %0 : i1 to i32
    %c0_i32_0 = arith.constant 0 : i32
    %2 = arith.cmpi ne, %1, %c0_i32_0 : i32
    scf.if %2 {
      %cst_9 = arith.constant 0.000000e+00 : f32
      %12 = vector.broadcast %cst_9 : f32 to vector<64x128xf32>
      %c0_10 = arith.constant 0 : index
      %c0_11 = arith.constant 0 : index
      %13 = vector.load %arg5[%c0_10, %c0_11] : memref<64x128xf32, #tpu.memory_space<vmem>>, vector<64x128xf32>
      tpu.vector_store %arg5[%c0_10, %c0_11], %12 {strides = array<i32>} : memref<64x128xf32, #tpu.memory_space<vmem>>, vector<64x128xf32>,
    } else {
    }
    %c0 = arith.constant 0 : index
    %c0_1 = arith.constant 0 : index
    %3 = vector.load %arg5[%c0, %c0_1] : memref<64x128xf32, #tpu.memory_space<vmem>>, vector<64x128xf32>
    %c0_2 = arith.constant 0 : index
    %c0_3 = arith.constant 0 : index
    %4 = vector.load %arg2[%c0_2, %c0_3] : memref<64x128xbf16, #tpu.memory_space<vmem>>, vector<64x128xbf16>
    %c0_4 = arith.constant 0 : index
    %c0_5 = arith.constant 0 : index
    %5 = vector.load %arg3[%c0_4, %c0_5] : memref<128x128xbf16, #tpu.memory_space<vmem>>, vector<128x128xbf16>
    %cst = arith.constant dense<0.000000e+00> : vector<64x128xf32>
    %6 = tpu.matmul %4, %5, %cst {dimension_numbers = #tpu.dot_dimension_numbers<[1], [0], [0], [1], [0, 0, 1, 1], [], []>} : vector<64x128xbf16>, vector<128x128xbf16>, vector<64x128xf32> -> vector<64x128xf32>
    %7 = arith.addf %3, %6 : vector<64x128xf32>
    %c0_6 = arith.constant 0 : index
    %c0_7 = arith.constant 0 : index
    %8 = vector.load %arg5[%c0_6, %c0_7] : memref<64x128xf32, #tpu.memory_space<vmem>>, vector<64x128xf32>
    tpu.vector_store %arg5[%c0_6, %c0_7], %7 {strides = array<i32>} : memref<64x128xf32, #tpu.memory_space<vmem>>, vector<64x128xf32>,
    %c1_i32 = arith.constant 1 : i32
    %9 = arith.cmpi eq, %arg1, %c1_i32 : i32
    %10 = arith.extui %9 : i1 to i32
    %c0_i32_8 = arith.constant 0 : i32
    %11 = arith.cmpi ne, %10, %c0_i32_8 : i32
    scf.if %11 {
      %c0_9 = arith.constant 0 : index
      %c0_10 = arith.constant 0 : index
      %12 = vector.load %arg5[%c0_9, %c0_10] : memref<64x128xf32, #tpu.memory_space<vmem>>, vector<64x128xf32>
      %13 = vector.extract_strided_slice %12 {offsets = [0, 64], sizes = [64, 1], strides = [1, 1]} : vector<64x128xf32> to vector<64x1xf32>
      %cst_11 = arith.constant 1.000000e+00 : f32
      %14 = vector.broadcast %cst_11 : f32 to vector<64x1xf32>
      %15 = arith.maximumf %13, %14 : vector<64x1xf32>
      %cst_12 = arith.constant 1.000000e+00 : f32
      %16 = vector.broadcast %cst_12 : f32 to vector<64x1xf32>
      %17 = arith.divf %16, %15 : vector<64x1xf32>
      %18 = vector.broadcast %17 : vector<64x1xf32> to vector<64x128xf32>
      %19 = arith.mulf %12, %18 : vector<64x128xf32>
      %c0_13 = arith.constant 0 : index
      %c0_14 = arith.constant 0 : index
      %20 = vector.load %arg4[%c0_13, %c0_14] : memref<64x128xf32, #tpu.memory_space<vmem>>, vector<64x128xf32>
      tpu.vector_store %arg4[%c0_13, %c0_14], %19 {strides = array<i32>} : memref<64x128xf32, #tpu.memory_space<vmem>>, vector<64x128xf32>,
    } else {
    }
    return
  }
  func.func @transform_0(%arg0: i32, %arg1: i32) -> (i32, i32) {
    %c0_i32 = arith.constant 0 : i32
    return %arg0, %arg1 : i32, i32
  }
  func.func @transform_1(%arg0: i32, %arg1: i32) -> (i32, i32) {
    %c0_i32 = arith.constant 0 : i32
    %c0_i32_0 = arith.constant 0 : i32
    return %arg1, %c0_i32 : i32, i32
  }
  func.func @transform_2(%arg0: i32, %arg1: i32) -> (i32, i32) {
    %c0_i32 = arith.constant 0 : i32
    %c0_i32_0 = arith.constant 0 : i32
    return %arg0, %c0_i32 : i32, i32
  }
}

</mosaic_0001>

<llo_original>
// kernel: tpu_custom_call.1
$region0: #{tpu_custom_call.1}
  #allocation0 [shape = 'u32[]', space=smem, size = 0x4, offset = 0x4, fixed_abs, tag = 'smem constant byte address 0x4 - core index']
  #allocation1 [shape = 'u32[72,128]{1,0:T(1,128)}', space=vmem, size = 0x9000, scoped, tag = 'internal scratch']
  #allocation2 [shape = 'f32[64,128]{1,0:T(8,128)}', space=vmem, size = 0x8000, scoped, tag = 'scratch operand']
  %s0 = inlined_call_operand.hbm [shape: bf16[128,256], index: 0, kind: input, shape index: {}]
  %s1 = inlined_call_operand.hbm [shape: bf16[256,128], index: 1, kind: input, shape index: {}]
  %s2 = inlined_call_operand.hbm [shape: f32[128,128], index: 2, kind: output, shape index: {}]
  %s3 = sld [smem:[#allocation0]]
  $region57: #{tpu_custom_call.1} parent=0
    _
  %s5 = ssub.s32 1, %s3
  %s6 = scalar_select 0, %s5, %s3
  $region1: #{tpu_custom_call.1} parent=0
    #allocation3 [shape = 'u8[32768]{0}', space=vmem, size = 0x8000, scoped, tag = 'input window, operand 0']
    #allocation4 [shape = 's32[2]{0}', space=sflag, size = 0x8, scoped, tag = 'scoped memory for tpu_custom_call.1']
    #allocation5 [shape = 's32[2]{0}', space=sflag, size = 0x8, scoped, tag = 'scoped memory for tpu_custom_call.1']
    #allocation6 [shape = 'u8[65536]{0}', space=vmem, size = 0x10000, scoped, tag = 'input window, operand 1']
    #allocation7 [shape = 's32[2]{0}', space=sflag, size = 0x8, scoped, tag = 'scoped memory for tpu_custom_call.1']
    #allocation8 [shape = 'u8[65536]{0}', space=vmem, size = 0x10000, scoped, tag = 'output window, operand 0']
    %7 = vsyncpa [#allocation4], 0
    %s8 = scalar_lea.sflag [#allocation4], 1
    %9 = vsyncpa %s8, 0
    %10 = vsyncpa [#allocation7], 0
    %s11 = scalar_lea.sflag [#allocation7], 1
    %12 = vsyncpa %s11, 0
    %13 = vsyncpa [#allocation5], 0
    %s14 = scalar_lea.sflag [#allocation5], 1
    %15 = vsyncpa %s14, 0
    loop: start=0, step=1, limit=6
    $region2: #{tpu_custom_call.1} parent=1 // loop_pre_header
      _
    $region3: #{tpu_custom_call.1} parent=1 // loop_header
      %s17 = sphi 0, %s21
      %p18 = scmp.ge.s32.totalorder %s17, 6
      %s24 = sphi 0, %s36
      %s25 = sphi 0, %s32
      %s26 = sphi 0, %s24
      %s27 = sphi 0, %s25
      %s28 = sphi 0, %s26
      %s29 = sphi 0, %s27
      %s41 = sphi 0, %s43
      %s44 = sphi 0, %s41
      %s45 = sphi 0, %s44
      %s61 = sphi 0, %s45
      %s67 = sphi 0, %s69
      %s70 = sphi 0, %s67
      %s71 = sphi 0, %s70
      %s87 = sphi 0, %s71
      %s93 = sphi 0, %s95
      %s96 = sphi 0, %s93
      %s97 = sphi 0, %s96
      %s113 = sphi 0, %s97
    $region4: #{tpu_custom_call.1} parent=1 // loop_header_branch
      %20 = sbr.rel (%p18) target = $region8
    $region5: #{tpu_custom_call.1} parent=1 // loop_body
      %s22 = ssub.s32 %s17, 1
      %s23 = ssub.s32 %s17, 2
      %s30 = sadd.s32 1, %s25
      %p31 = scmp.ge.s32.totalorder %s30, 2
      %s32 = scalar_select %p31, 0, %s30
      %s33 = sadd.s32 1, %s24
      %s34 = scalar_select %p31, %s33, %s24
      %p35 = scmp.ge.s32.totalorder %s34, 2
      %s36 = scalar_select %p35, 0, %s34
      %s37 = ssub.s32 %s24, %s36
      %s38 = ssub.s32 %s25, %s32
      %s39 = sor.u32 %s37, %s38
      %p40 = scmp.eq.s32.totalorder %s39, 0
      %s42 = sadd.s32 %s41, 1
      %s43 = scalar_select %p40, %s41, %s42
      %p46 = pneg %p40
      %p47 = scmp.eq.s32.totalorder %s17, 3
      %p48 = por %p46, %p47
      %p49 = scmp.ne.s32.totalorder %s41, %s44
      %p50 = scmp.eq.s32.totalorder %s17, 0
      %p51 = por %p49, %p50
      %p52 = scmp.ne.s32.totalorder %s41, %s44
      %p53 = scmp.eq.s32.totalorder %s22, 3
      %p54 = por %p52, %p53
      %p55 = scmp.ne.s32.totalorder %s44, %s45
      %p56 = scmp.eq.s32.totalorder %s22, 0
      %p57 = por %p55, %p56
      %p58 = scmp.ne.s32.totalorder %s44, %s45
      %p59 = scmp.eq.s32.totalorder %s23, 3
      %p60 = por %p58, %p59
      %p62 = scmp.ne.s32.totalorder %s45, %s61
      %p63 = scmp.eq.s32.totalorder %s23, 0
      %p64 = por %p62, %p63
      %s65 = ssub.s32 %s25, %s32
      %p66 = scmp.eq.s32.totalorder %s65, 0
      %s68 = sadd.s32 %s67, 1
      %s69 = scalar_select %p66, %s67, %s68
      %p72 = pneg %p66
      %p73 = scmp.eq.s32.totalorder %s17, 3
      %p74 = por %p72, %p73
      %p75 = scmp.ne.s32.totalorder %s67, %s70
      %p76 = scmp.eq.s32.totalorder %s17, 0
      %p77 = por %p75, %p76
      %p78 = scmp.ne.s32.totalorder %s67, %s70
      %p79 = scmp.eq.s32.totalorder %s22, 3
      %p80 = por %p78, %p79
      %p81 = scmp.ne.s32.totalorder %s70, %s71
      %p82 = scmp.eq.s32.totalorder %s22, 0
      %p83 = por %p81, %p82
      %p84 = scmp.ne.s32.totalorder %s70, %s71
      %p85 = scmp.eq.s32.totalorder %s23, 3
      %p86 = por %p84, %p85
      %p88 = scmp.ne.s32.totalorder %s71, %s87
      %p89 = scmp.eq.s32.totalorder %s23, 0
      %p90 = por %p88, %p89
      %s91 = ssub.s32 %s24, %s36
      %p92 = scmp.eq.s32.totalorder %s91, 0
      %s94 = sadd.s32 %s93, 1
      %s95 = scalar_select %p92, %s93, %s94
      %p98 = pneg %p92
      %p99 = scmp.eq.s32.totalorder %s17, 3
      %p100 = por %p98, %p99
      %p101 = scmp.ne.s32.totalorder %s93, %s96
      %p102 = scmp.eq.s32.totalorder %s17, 0
      %p103 = por %p101, %p102
      %p104 = scmp.ne.s32.totalorder %s93, %s96
      %p105 = scmp.eq.s32.totalorder %s22, 3
      %p106 = por %p104, %p105
      %p107 = scmp.ne.s32.totalorder %s96, %s97
      %p108 = scmp.eq.s32.totalorder %s22, 0
      %p109 = por %p107, %p108
      %p110 = scmp.ne.s32.totalorder %s96, %s97
      %p111 = scmp.eq.s32.totalorder %s23, 3
      %p112 = por %p110, %p111
      %p114 = scmp.ne.s32.totalorder %s97, %s113
      %p115 = scmp.eq.s32.totalorder %s23, 0
      %p116 = por %p114, %p115
      %p117 = scmp.le.s32.totalorder 1, %s17
      %p118 = scmp.lt.s32.totalorder %s17, 5
      %p119 = pnand %p117, %p118
      %p120 = pneg %p119
      // Predicated region
      $region9: #{tpu_custom_call.1} parent=5 // pred_check
        _
      $region10: #{tpu_custom_call.1} parent=5 // pred_check_branch
        %122 = sbr.rel (%p119) target = $region12
      $region11: #{tpu_custom_call.1} parent=5 // pred_region
        %s123 = ssub.s32 %s17, 1
      $region12: #{tpu_custom_call.1} parent=5 // pred_fallthru
        _
      %p124 = scmp.lt.s32.totalorder %s17, 4
      // Predicated region
      $region13: #{tpu_custom_call.1} parent=5 // pred_check
        %p125 = pneg %p124
      $region14: #{tpu_custom_call.1} parent=5 // pred_check_branch
        %127 = sbr.rel (%p125) target = $region16
      $region15: #{tpu_custom_call.1} parent=5 // pred_region
        // Predicated region
        $region17: #{tpu_custom_call.1} parent=15 // pred_check
          %p128 = pneg %p51
        $region18: #{tpu_custom_call.1} parent=15 // pred_check_branch
          %130 = sbr.rel (%p128) target = $region20
        $region19: #{tpu_custom_call.1} parent=15 // pred_region
          %s131 = sand.u32 %s41, 1
          %s132 = scalar_lea.sflag [#allocation4], %s131
          %s133 = sand.u32 %s41, 1
          %s134 = smul.addr %s133, 32
          %s135 = scalar_lea.vmem [#allocation3], %s134
          %s136 = smul.u32 8, %s24
          %138 = vsyncadd %s132, 0
          %s139 = smul.addr %s136, 2
          %s140 = sadd.s32 %s25, %s139
          %s141 = smul.addr %s140, 4
          %s142 = scalar_lea.hbm %s0, %s141
          %s143 = sshll.u32 %s142, 4
          %s144 = int_to_ptr.hbm [resolvable:$true] %s143
          %s145 = sshll.u32 %s135, 4
          %s146 = int_to_ptr.vmem [resolvable:$true] %s145
          %151 = dma.hbm_to_vmem [thread:$0]  %s144, 512, %s146, %s132, 128, 64, 4
        $region20: #{tpu_custom_call.1} parent=15 // pred_fallthru
          _
        // Predicated region
        $region21: #{tpu_custom_call.1} parent=15 // pred_check
          %p152 = pneg %p77
        $region22: #{tpu_custom_call.1} parent=15 // pred_check_branch
          %154 = sbr.rel (%p152) target = $region24
        $region23: #{tpu_custom_call.1} parent=15 // pred_region
          %s155 = sand.u32 %s67, 1
          %s156 = scalar_lea.sflag [#allocation7], %s155
          %s157 = sand.u32 %s67, 1
          %s158 = smul.addr %s157, 64
          %s159 = scalar_lea.vmem [#allocation6], %s158
          %s160 = smul.u32 16, %s25
          %162 = vsyncadd %s156, 0
          %s163 = smul.addr %s160, 4
          %s164 = scalar_lea.hbm %s1, %s163
          %s165 = sshll.u32 %s164, 4
          %s166 = int_to_ptr.hbm [resolvable:$true] %s165
          %s167 = sshll.u32 %s159, 4
          %s168 = int_to_ptr.vmem [resolvable:$true] %s167
          %173 = dma.hbm_to_vmem [thread:$0]  %s166, 1024, %s168, %s156, 64, 64, 4
        $region24: #{tpu_custom_call.1} parent=15 // pred_fallthru
          _
      $region16: #{tpu_custom_call.1} parent=5 // pred_fallthru
        _
      %p174 = scmp.le.s32.totalorder 1, %s17
      %p175 = scmp.lt.s32.totalorder %s17, 5
      %p176 = pnand %p174, %p175
      %p177 = pneg %p176
      // Predicated region
      $region25: #{tpu_custom_call.1} parent=5 // pred_check
        _
      $region26: #{tpu_custom_call.1} parent=5 // pred_check_branch
        %179 = sbr.rel (%p176) target = $region28
      $region27: #{tpu_custom_call.1} parent=5 // pred_region
        %s180 = ssub.s32 %s17, 1
        %s181 = sand.u32 %s44, 1
        %s182 = scalar_lea.sflag [#allocation4], %s181
        %s183 = sand.u32 %s44, 1
        %s184 = smul.addr %s183, 32
        %s185 = scalar_lea.vmem [#allocation3], %s184
        // Predicated region
        $region29: #{tpu_custom_call.1} parent=27 // pred_check
          %p186 = pneg %p57
        $region30: #{tpu_custom_call.1} parent=27 // pred_check_branch
          %188 = sbr.rel (%p186) target = $region32
        $region31: #{tpu_custom_call.1} parent=27 // pred_region
          %190 = dma.done %s182, 512
        $region32: #{tpu_custom_call.1} parent=27 // pred_fallthru
          _
        %s191 = sand.u32 %s70, 1
        %s192 = scalar_lea.sflag [#allocation7], %s191
        %s193 = sand.u32 %s70, 1
        %s194 = smul.addr %s193, 64
        %s195 = scalar_lea.vmem [#allocation6], %s194
        // Predicated region
        $region33: #{tpu_custom_call.1} parent=27 // pred_check
          %p196 = pneg %p83
        $region34: #{tpu_custom_call.1} parent=27 // pred_check_branch
          %198 = sbr.rel (%p196) target = $region36
        $region35: #{tpu_custom_call.1} parent=27 // pred_region
          %200 = dma.done %s192, 1024
        $region36: #{tpu_custom_call.1} parent=27 // pred_fallthru
          _
        %s201 = sand.u32 %s44, 1
        %s202 = scalar_lea.sflag [#allocation4], %s201
        %s203 = sand.u32 %s44, 1
        %s204 = smul.addr %s203, 32
        %s205 = scalar_lea.vmem [#allocation3], %s204
        %p206 = pneg %p57
        %p207 = pneg %p54
        %s208 = sand.u32 %s70, 1
        %s209 = scalar_lea.sflag [#allocation7], %s208
        %s210 = sand.u32 %s70, 1
        %s211 = smul.addr %s210, 64
        %s212 = scalar_lea.vmem [#allocation6], %s211
        %p213 = pneg %p83
        %p214 = pneg %p80
        %p215 = pneg %p109
        %p216 = pneg %p106
        %s217 = sand.u32 %s96, 1
        %s218 = scalar_lea.sflag [#allocation5], %s217
        %s219 = sand.u32 %s96, 1
        %s220 = smul.addr %s219, 64
        %s221 = scalar_lea.vmem [#allocation8], %s220
        %s222 = smul.u32 8, %s26
        %s223 = smul.u32 16, %s27
        %s224 = smul.u32 8, %s26
        %p225 = scmp.eq.s32.totalorder %s27, 0
        // Predicated region
        $region37: #{tpu_custom_call.1} parent=27 // pred_check
          %p226 = pneg %p225
        $region38: #{tpu_custom_call.1} parent=27 // pred_check_branch
          %228 = sbr.rel (%p226) target = $region40
        $region39: #{tpu_custom_call.1} parent=27 // pred_region
          %229 = vst [vmem:[#allocation2] sm:$0xff] 0.0
          %230 = vst [vmem:[#allocation2 + $0x8] sm:$0xff] 0.0
          %231 = vst [vmem:[#allocation2 + $0x10] sm:$0xff] 0.0
          %232 = vst [vmem:[#allocation2 + $0x18] sm:$0xff] 0.0
          %233 = vst [vmem:[#allocation2 + $0x20] sm:$0xff] 0.0
          %234 = vst [vmem:[#allocation2 + $0x28] sm:$0xff] 0.0
          %235 = vst [vmem:[#allocation2 + $0x30] sm:$0xff] 0.0
          %236 = vst [vmem:[#allocation2 + $0x38] sm:$0xff] 0.0
        $region40: #{tpu_custom_call.1} parent=27 // pred_fallthru
          _
        %v237 = vld [vmem:[#allocation2] sm:$0xff]
        %v238 = vld [vmem:[#allocation2 + $0x8] sm:$0xff]
        %v239 = vld [vmem:[#allocation2 + $0x10] sm:$0xff]
        %v240 = vld [vmem:[#allocation2 + $0x18] sm:$0xff]
        %v241 = vld [vmem:[#allocation2 + $0x20] sm:$0xff]
        %v242 = vld [vmem:[#allocation2 + $0x28] sm:$0xff]
        %v243 = vld [vmem:[#allocation2 + $0x30] sm:$0xff]
        %v244 = vld [vmem:[#allocation2 + $0x38] sm:$0xff]
        %v245 = vld [vmem:[%s185] sm:$0xf]
        %v246 = vld [vmem:[%s185 + $0x4] sm:$0xf]
        %v247 = vld [vmem:[%s185 + $0x8] sm:$0xf]
        %v248 = vld [vmem:[%s185 + $0xc] sm:$0xf]
        %v249 = vld [vmem:[%s185 + $0x10] sm:$0xf]
        %v250 = vld [vmem:[%s185 + $0x14] sm:$0xf]
        %v251 = vld [vmem:[%s185 + $0x18] sm:$0xf]
        %v252 = vld [vmem:[%s185 + $0x1c] sm:$0xf]
        %v253 = vld [vmem:[%s195] sm:$0xf]
        %v254 = vld [vmem:[%s195 + $0x4] sm:$0xf]
        %v255 = vld [vmem:[%s195 + $0x8] sm:$0xf]
        %v256 = vld [vmem:[%s195 + $0xc] sm:$0xf]
        %v257 = vld [vmem:[%s195 + $0x10] sm:$0xf]
        %v258 = vld [vmem:[%s195 + $0x14] sm:$0xf]
        %v259 = vld [vmem:[%s195 + $0x18] sm:$0xf]
        %v260 = vld [vmem:[%s195 + $0x1c] sm:$0xf]
        %v261 = vld [vmem:[%s195 + $0x20] sm:$0xf]
        %v262 = vld [vmem:[%s195 + $0x24] sm:$0xf]
        %v263 = vld [vmem:[%s195 + $0x28] sm:$0xf]
        %v264 = vld [vmem:[%s195 + $0x2c] sm:$0xf]
        %v265 = vld [vmem:[%s195 + $0x30] sm:$0xf]
        %v266 = vld [vmem:[%s195 + $0x34] sm:$0xf]
        %v267 = vld [vmem:[%s195 + $0x38] sm:$0xf]
        %v268 = vld [vmem:[%s195 + $0x3c] sm:$0xf]
        %v277 = vunpack.c.l.b16 %v245
        %v278 = vunpack.c.l.b16 %v246
        %v279 = vunpack.c.l.b16 %v247
        %v280 = vunpack.c.l.b16 %v248
        %v281 = vunpack.c.l.b16 %v249
        %v282 = vunpack.c.l.b16 %v250
        %v283 = vunpack.c.l.b16 %v251
        %v284 = vunpack.c.l.b16 %v252
        %v285 = vpack.c.b16 %v278, %v277
        %v286 = vpack.c.b16 %v280, %v279
        %v287 = vpack.c.b16 %v282, %v281
        %v288 = vpack.c.b16 %v284, %v283
        %v309 = vunpack.c.l.b16 %v253
        %v310 = vunpack.c.l.b16 %v254
        %v311 = vunpack.c.l.b16 %v255
        %v312 = vunpack.c.l.b16 %v256
        %v313 = vunpack.c.l.b16 %v257
        %v314 = vunpack.c.l.b16 %v258
        %v315 = vunpack.c.l.b16 %v259
        %v316 = vunpack.c.l.b16 %v260
        %v317 = vunpack.c.l.b16 %v261
        %v318 = vunpack.c.l.b16 %v262
        %v319 = vunpack.c.l.b16 %v263
        %v320 = vunpack.c.l.b16 %v264
        %v321 = vunpack.c.l.b16 %v265
        %v322 = vunpack.c.l.b16 %v266
        %v323 = vunpack.c.l.b16 %v267
        %v324 = vunpack.c.l.b16 %v268
        %v325 = vpack.c.b16 %v310, %v309
        %v326 = vpack.c.b16 %v312, %v311
        %v327 = vpack.c.b16 %v314, %v313
        %v328 = vpack.c.b16 %v316, %v315
        %v329 = vpack.c.b16 %v318, %v317
        %v330 = vpack.c.b16 %v320, %v319
        %v331 = vpack.c.b16 %v322, %v321
        %v332 = vpack.c.b16 %v324, %v323
        %341 = vmatpush.bf16.msra.mxu0 %v332
        %342 = vmatpush.bf16.msra.mxu0 %v331
        %343 = vmatpush.bf16.msra.mxu0 %v330
        %344 = vmatpush.bf16.msra.mxu0 %v329
        %345 = vmatpush.bf16.msra.mxu0 %v328
        %346 = vmatpush.bf16.msra.mxu0 %v327
        %347 = vmatpush.bf16.msra.mxu0 %v326
        %348 = vmatpush.bf16.msra.mxu0 %v325
        %349 = vmatmul.bf16.gmra.mxu0 %v285
        %v350 = vpop.f32.mrf.mxu0
        %v351 = vadd.f32 0.0, %v350
        %v352 = vpop.f32.mrf.mxu0
        %v353 = vadd.f32 0.0, %v352
        %354 = vmatmul.bf16.gmra.mxu0 %v286
        %v355 = vpop.f32.mrf.mxu0
        %v356 = vadd.f32 0.0, %v355
        %v357 = vpop.f32.mrf.mxu0
        %v358 = vadd.f32 0.0, %v357
        %359 = vmatmul.bf16.gmra.mxu0 %v287
        %v360 = vpop.f32.mrf.mxu0
        %v361 = vadd.f32 0.0, %v360
        %v362 = vpop.f32.mrf.mxu0
        %v363 = vadd.f32 0.0, %v362
        %364 = vmatmul.bf16.gmra.mxu0 %v288
        %v365 = vpop.f32.mrf.mxu0
        %v366 = vadd.f32 0.0, %v365
        %v367 = vpop.f32.mrf.mxu0
        %v368 = vadd.f32 0.0, %v367
        %369 = vdwg.mxu0
        %v370 = vadd.f32 %v237, %v351
        %v371 = vadd.f32 %v238, %v353
        %v372 = vadd.f32 %v239, %v356
        %v373 = vadd.f32 %v240, %v358
        %v374 = vadd.f32 %v241, %v361
        %v375 = vadd.f32 %v242, %v363
        %v376 = vadd.f32 %v243, %v366
        %v377 = vadd.f32 %v244, %v368
        %378 = vst [vmem:[#allocation2] sm:$0xff] %v370
        %379 = vst [vmem:[#allocation2 + $0x8] sm:$0xff] %v371
        %380 = vst [vmem:[#allocation2 + $0x10] sm:$0xff] %v372
        %381 = vst [vmem:[#allocation2 + $0x18] sm:$0xff] %v373
        %382 = vst [vmem:[#allocation2 + $0x20] sm:$0xff] %v374
        %383 = vst [vmem:[#allocation2 + $0x28] sm:$0xff] %v375
        %384 = vst [vmem:[#allocation2 + $0x30] sm:$0xff] %v376
        %385 = vst [vmem:[#allocation2 + $0x38] sm:$0xff] %v377
        %p386 = scmp.eq.s32.totalorder %s27, 1
        // Predicated region
        $region41: #{tpu_custom_call.1} parent=27 // pred_check
          %p387 = pneg %p386
        $region42: #{tpu_custom_call.1} parent=27 // pred_check_branch
          %389 = sbr.rel (%p387) target = $region44
        $region43: #{tpu_custom_call.1} parent=27 // pred_region
          %v390 = vld [vmem:[#allocation2] sm:$0xff]
          %v391 = vld [vmem:[#allocation2 + $0x8] sm:$0xff]
          %v392 = vld [vmem:[#allocation2 + $0x10] sm:$0xff]
          %v393 = vld [vmem:[#allocation2 + $0x18] sm:$0xff]
          %v394 = vld [vmem:[#allocation2 + $0x20] sm:$0xff]
          %v395 = vld [vmem:[#allocation2 + $0x28] sm:$0xff]
          %v396 = vld [vmem:[#allocation2 + $0x30] sm:$0xff]
          %v397 = vld [vmem:[#allocation2 + $0x38] sm:$0xff]
          %v398 = vmax.f32 %v390, 1.0
          %v399 = vmax.f32 %v391, 1.0
          %v400 = vmax.f32 %v392, 1.0
          %v401 = vmax.f32 %v393, 1.0
          %v402 = vmax.f32 %v394, 1.0
          %v403 = vmax.f32 %v395, 1.0
          %v404 = vmax.f32 %v396, 1.0
          %v405 = vmax.f32 %v397, 1.0
          %v406 = vrcp.pop %v398
          %v407 = vmul.f32 %v398, %v406
          %v408 = vsub.f32 1.0, %v407
          %v409 = vmul.f32 %v406, %v408
          %v410 = vadd.f32 %v406, %v409
          %vm411 = vweird.f32 %v398
          %vm412 = vweird.f32 %v406
          %vm413 = vmor %vm411, %vm412
          %v414 = vsel %vm413, %v406, %v410
          %v415 = vand.u32 2147483647, %v398
          %vm416 = vcmp.eq.f32.partialorder %v415, 8.507059e+37
          %v417 = vand.u32 %v398, 2147483648
          %v418 = vor.u32 1.1754944e-38, %v417
          %v419 = vsel %vm416, %v418, %v414
          %v420 = vmul.f32 1.0, %v419
          %v421 = vrcp.pop %v399
          %v422 = vmul.f32 %v399, %v421
          %v423 = vsub.f32 1.0, %v422
          %v424 = vmul.f32 %v421, %v423
          %v425 = vadd.f32 %v421, %v424
          %vm426 = vweird.f32 %v399
          %vm427 = vweird.f32 %v421
          %vm428 = vmor %vm426, %vm427
          %v429 = vsel %vm428, %v421, %v425
          %v430 = vand.u32 2147483647, %v399
          %vm431 = vcmp.eq.f32.partialorder %v430, 8.507059e+37
          %v432 = vand.u32 %v399, 2147483648
          %v433 = vor.u32 1.1754944e-38, %v432
          %v434 = vsel %vm431, %v433, %v429
          %v435 = vmul.f32 1.0, %v434
          %v436 = vrcp.pop %v400
          %v437 = vmul.f32 %v400, %v436
          %v438 = vsub.f32 1.0, %v437
          %v439 = vmul.f32 %v436, %v438
          %v440 = vadd.f32 %v436, %v439
          %vm441 = vweird.f32 %v400
          %vm442 = vweird.f32 %v436
          %vm443 = vmor %vm441, %vm442
          %v444 = vsel %vm443, %v436, %v440
          %v445 = vand.u32 2147483647, %v400
          %vm446 = vcmp.eq.f32.partialorder %v445, 8.507059e+37
          %v447 = vand.u32 %v400, 2147483648
          %v448 = vor.u32 1.1754944e-38, %v447
          %v449 = vsel %vm446, %v448, %v444
          %v450 = vmul.f32 1.0, %v449
          %v451 = vrcp.pop %v401
          %v452 = vmul.f32 %v401, %v451
          %v453 = vsub.f32 1.0, %v452
          %v454 = vmul.f32 %v451, %v453
          %v455 = vadd.f32 %v451, %v454
          %vm456 = vweird.f32 %v401
          %vm457 = vweird.f32 %v451
          %vm458 = vmor %vm456, %vm457
          %v459 = vsel %vm458, %v451, %v455
          %v460 = vand.u32 2147483647, %v401
          %vm461 = vcmp.eq.f32.partialorder %v460, 8.507059e+37
          %v462 = vand.u32 %v401, 2147483648
          %v463 = vor.u32 1.1754944e-38, %v462
          %v464 = vsel %vm461, %v463, %v459
          %v465 = vmul.f32 1.0, %v464
          %v466 = vrcp.pop %v402
          %v467 = vmul.f32 %v402, %v466
          %v468 = vsub.f32 1.0, %v467
          %v469 = vmul.f32 %v466, %v468
          %v470 = vadd.f32 %v466, %v469
          %vm471 = vweird.f32 %v402
          %vm472 = vweird.f32 %v466
          %vm473 = vmor %vm471, %vm472
          %v474 = vsel %vm473, %v466, %v470
          %v475 = vand.u32 2147483647, %v402
          %vm476 = vcmp.eq.f32.partialorder %v475, 8.507059e+37
          %v477 = vand.u32 %v402, 2147483648
          %v478 = vor.u32 1.1754944e-38, %v477
          %v479 = vsel %vm476, %v478, %v474
          %v480 = vmul.f32 1.0, %v479
          %v481 = vrcp.pop %v403
          %v482 = vmul.f32 %v403, %v481
          %v483 = vsub.f32 1.0, %v482
          %v484 = vmul.f32 %v481, %v483
          %v485 = vadd.f32 %v481, %v484
          %vm486 = vweird.f32 %v403
          %vm487 = vweird.f32 %v481
          %vm488 = vmor %vm486, %vm487
          %v489 = vsel %vm488, %v481, %v485
          %v490 = vand.u32 2147483647, %v403
          %vm491 = vcmp.eq.f32.partialorder %v490, 8.507059e+37
          %v492 = vand.u32 %v403, 2147483648
          %v493 = vor.u32 1.1754944e-38, %v492
          %v494 = vsel %vm491, %v493, %v489
          %v495 = vmul.f32 1.0, %v494
          %v496 = vrcp.pop %v404
          %v497 = vmul.f32 %v404, %v496
          %v498 = vsub.f32 1.0, %v497
          %v499 = vmul.f32 %v496, %v498
          %v500 = vadd.f32 %v496, %v499
          %vm501 = vweird.f32 %v404
          %vm502 = vweird.f32 %v496
          %vm503 = vmor %vm501, %vm502
          %v504 = vsel %vm503, %v496, %v500
          %v505 = vand.u32 2147483647, %v404
          %vm506 = vcmp.eq.f32.partialorder %v505, 8.507059e+37
          %v507 = vand.u32 %v404, 2147483648
          %v508 = vor.u32 1.1754944e-38, %v507
          %v509 = vsel %vm506, %v508, %v504
          %v510 = vmul.f32 1.0, %v509
          %v511 = vrcp.pop %v405
          %v512 = vmul.f32 %v405, %v511
          %v513 = vsub.f32 1.0, %v512
          %v514 = vmul.f32 %v511, %v513
          %v515 = vadd.f32 %v511, %v514
          %vm516 = vweird.f32 %v405
          %vm517 = vweird.f32 %v511
          %vm518 = vmor %vm516, %vm517
          %v519 = vsel %vm518, %v511, %v515
          %v520 = vand.u32 2147483647, %v405
          %vm521 = vcmp.eq.f32.partialorder %v520, 8.507059e+37
          %v522 = vand.u32 %v405, 2147483648
          %v523 = vor.u32 1.1754944e-38, %v522
          %v524 = vsel %vm521, %v523, %v519
          %v525 = vmul.f32 1.0, %v524
          %527 = vset.pattern.permute.xlu0 64
          %528 = vperm.xlu0 %527, %v420
          %v529 = vpop.permute.xlu0 %528
          %532 = vset.pattern.permute.xlu0 64
          %533 = vperm.xlu0 %532, %v435
          %v534 = vpop.permute.xlu0 %533
          %537 = vset.pattern.permute.xlu0 64
          %538 = vperm.xlu0 %537, %v450
          %v539 = vpop.permute.xlu0 %538
          %542 = vset.pattern.permute.xlu0 64
          %543 = vperm.xlu0 %542, %v465
          %v544 = vpop.permute.xlu0 %543
          %547 = vset.pattern.permute.xlu0 64
          %548 = vperm.xlu0 %547, %v480
          %v549 = vpop.permute.xlu0 %548
          %552 = vset.pattern.permute.xlu0 64
          %553 = vperm.xlu0 %552, %v495
          %v554 = vpop.permute.xlu0 %553
          %557 = vset.pattern.permute.xlu0 64
          %558 = vperm.xlu0 %557, %v510
          %v559 = vpop.permute.xlu0 %558
          %562 = vset.pattern.permute.xlu0 64
          %563 = vperm.xlu0 %562, %v525
          %v564 = vpop.permute.xlu0 %563
          %v566 = vmul.f32 %v390, %v529
          %v567 = vmul.f32 %v391, %v534
          %v568 = vmul.f32 %v392, %v539
          %v569 = vmul.f32 %v393, %v544
          %v570 = vmul.f32 %v394, %v549
          %v571 = vmul.f32 %v395, %v554
          %v572 = vmul.f32 %v396, %v559
          %v573 = vmul.f32 %v397, %v564
          %574 = vst [vmem:[%s221] sm:$0xff] %v566
          %575 = vst [vmem:[%s221 + $0x8] sm:$0xff] %v567
          %576 = vst [vmem:[%s221 + $0x10] sm:$0xff] %v568
          %577 = vst [vmem:[%s221 + $0x18] sm:$0xff] %v569
          %578 = vst [vmem:[%s221 + $0x20] sm:$0xff] %v570
          %579 = vst [vmem:[%s221 + $0x28] sm:$0xff] %v571
          %580 = vst [vmem:[%s221 + $0x30] sm:$0xff] %v572
          %581 = vst [vmem:[%s221 + $0x38] sm:$0xff] %v573
        $region44: #{tpu_custom_call.1} parent=27 // pred_fallthru
          _
        %s582 = sand.u32 %s96, 1
        %s583 = scalar_lea.sflag [#allocation5], %s582
        %s584 = sand.u32 %s96, 1
        %s585 = smul.addr %s584, 64
        %s586 = scalar_lea.vmem [#allocation8], %s585
        // Predicated region
        $region45: #{tpu_custom_call.1} parent=27 // pred_check
          %p587 = pneg %p106
        $region46: #{tpu_custom_call.1} parent=27 // pred_check_branch
          %589 = sbr.rel (%p587) target = $region48
        $region47: #{tpu_custom_call.1} parent=27 // pred_region
          %s590 = smul.u32 8, %s26
          %592 = vsyncadd %s583, 0
          %s593 = smul.addr %s590, 8
          %s594 = scalar_lea.hbm %s2, %s593
          %s595 = sshll.u32 %s586, 4
          %s596 = int_to_ptr.vmem [resolvable:$true] %s595
          %s597 = sshll.u32 %s594, 4
          %s598 = int_to_ptr.hbm [resolvable:$true] %s597
          %603 = dma.vmem_to_hbm [thread:$0]  %s596, 1024, %s598, %s583, 128, 128, 8
        $region48: #{tpu_custom_call.1} parent=27 // pred_fallthru
          _
      $region28: #{tpu_custom_call.1} parent=5 // pred_fallthru
        _
      %p604 = scmp.le.s32.totalorder 2, %s17
      // Predicated region
      $region49: #{tpu_custom_call.1} parent=5 // pred_check
        %p605 = pneg %p604
      $region50: #{tpu_custom_call.1} parent=5 // pred_check_branch
        %607 = sbr.rel (%p605) target = $region52
      $region51: #{tpu_custom_call.1} parent=5 // pred_region
        %s608 = ssub.s32 %s17, 2
        // Predicated region
        $region53: #{tpu_custom_call.1} parent=51 // pred_check
          %p609 = pneg %p112
        $region54: #{tpu_custom_call.1} parent=51 // pred_check_branch
          %611 = sbr.rel (%p609) target = $region56
        $region55: #{tpu_custom_call.1} parent=51 // pred_region
          %s612 = sand.u32 %s97, 1
          %s613 = scalar_lea.sflag [#allocation5], %s612
          %s614 = sand.u32 %s97, 1
          %s615 = smul.addr %s614, 64
          %s616 = scalar_lea.vmem [#allocation8], %s615
          %618 = dma.done %s613, 1024
        $region56: #{tpu_custom_call.1} parent=51 // pred_fallthru
          _
      $region52: #{tpu_custom_call.1} parent=5 // pred_fallthru
        _
    $region6: #{tpu_custom_call.1} parent=1 // loop_footer
      %s21 = sadd.s32 1, %s17
    $region7: #{tpu_custom_call.1} parent=1 // loop_footer_branch
      %16 = sbr.rel target = $region3
    $region8: #{tpu_custom_call.1} parent=1 // loop_exit
      _
    %619 = vsyncpa [#allocation4], 1
    %s620 = scalar_lea.sflag [#allocation4], 1
    %621 = vsyncpa %s620, 1
    %622 = vsyncpa [#allocation7], 1
    %s623 = scalar_lea.sflag [#allocation7], 1
    %624 = vsyncpa %s623, 1
    %625 = vsyncpa [#allocation5], 1
    %s626 = scalar_lea.sflag [#allocation5], 1
    %627 = vsyncpa %s626, 1

</llo_original>
